<compile_context>
chip_gen: v6e
topology: v6e:2x2x1
jax: 0.10.0
libtpu: 0.0.40
codegen_flags: <defaults>
</compile_context>

<pallas_src>
import math

import jax
import jax.numpy as jnp
from jax.experimental import pallas as pl
from jax.experimental.pallas import tpu as pltpu

EMBED_DIM = 32
NUM_HEADS = 2
HEAD_DIM = EMBED_DIM // NUM_HEADS


def _mha_kernel(x_ref, wqkv_ref, bqkv_ref, wo_ref, bo_ref, out_ref, attnw_ref):
    # x_ref: (Bt, S, E) block (Bt batch elements per grid step)
    Bt, S, E = x_ref.shape
    x = x_ref[...].reshape(Bt * S, E)  # flatten rows for the projections

    # Fused QKV projection: weights already transposed (E, 3E) and the Q part
    # already scaled by 1/sqrt(HEAD_DIM).  One MXU matmul instead of three.
    qkv = jnp.dot(x, wqkv_ref[...], preferred_element_type=jnp.float32) + bqkv_ref[...]

    inv_heads = 1.0 / NUM_HEADS

    # Bt and NUM_HEADS are tiny static ints -> fully unrolled Python loops.
    for b in range(Bt):
        r = b * S
        attn_sum = jnp.zeros((S, S), jnp.float32)
        proj_acc = jnp.zeros((S, E), jnp.float32)
        for h in range(NUM_HEADS):
            lo = h * HEAD_DIM
            qh = qkv[r:r + S, lo:lo + HEAD_DIM]
            kh = qkv[r:r + S, E + lo:E + lo + HEAD_DIM]
            vh = qkv[r:r + S, 2 * E + lo:2 * E + lo + HEAD_DIM]

            # q @ k^T expressed via dot_general contraction (no explicit
            # transpose materialized); scale is already folded into Wq.
            scores = jax.lax.dot_general(
                qh, kh, (((1,), (1,)), ((), ())),
                preferred_element_type=jnp.float32)  # (S, S)

            # numerically-stable softmax; divide -> reciprocal * multiply
            scores = scores - jnp.max(scores, axis=-1, keepdims=True)
            p = jnp.exp(scores)
            p = p * pl.reciprocal(jnp.sum(p, axis=-1, keepdims=True))

            attn_sum = attn_sum + p
            ctx_h = jnp.dot(p, vh, preferred_element_type=jnp.float32)  # (S, HEAD_DIM)

            # Partial output projection with the matching K-slice of Wo^T:
            # out = sum_h ctx_h @ Wo^T[h*HD:(h+1)*HD, :]  (no lane concat).
            proj_acc = proj_acc + jnp.dot(
                ctx_h, wo_ref[lo:lo + HEAD_DIM, :],
                preferred_element_type=jnp.float32)

        out_ref[b] = (proj_acc + bo_ref[...]).astype(out_ref.dtype)
        attnw_ref[b] = (attn_sum * inv_heads).astype(attnw_ref.dtype)


def prepare_params(params):
    """One-time parameter preparation (do this OUTSIDE the per-call path):
       fuse + transpose the QKV weights, fold the attention scale into Q,
       transpose the output-projection weight."""
    wq, wk, wv, bq, bk, bv, wo, bo = params
    E = wq.shape[0]
    scale = 1.0 / math.sqrt(HEAD_DIM)
    w_qkv_t = jnp.concatenate([(wq * scale).T, wk.T, wv.T], axis=1)   # (E, 3E)
    b_qkv = jnp.concatenate([bq * scale, bk, bv]).reshape(1, 3 * E)   # (1, 3E)
    wo_t = wo.T                                                       # (E, E)
    bo2 = bo.reshape(1, E)                                            # (1, E)
    return (w_qkv_t, b_qkv, wo_t, bo2)


def self_attention_block(x, prepared):
    """x: (B, S, E) float32.  prepared: output of prepare_params.
       Returns (attn_output (B,S,E), attn_weights (B,S,S))."""
    B, S, E = x.shape
    assert E == EMBED_DIM
    w_qkv_t, b_qkv, wo_t, bo = prepared

    # Keep (at least) 2 parallel grid steps so both v7x TensorCores get work;
    # pack the rest of the batch into each step to amortize per-step overhead.
    if B >= 2 and B % 2 == 0:
        num_blocks = 2
    else:
        num_blocks = B
    Bt = B // num_blocks

    out, attnw = pl.pallas_call(
        _mha_kernel,
        out_shape=(
            jax.ShapeDtypeStruct((B, S, E), jnp.float32),
            jax.ShapeDtypeStruct((B, S, S), jnp.float32),
        ),
        grid_spec=pltpu.PrefetchScalarGridSpec(
            num_scalar_prefetch=0,
            grid=(num_blocks,),
            in_specs=[
                pl.BlockSpec((Bt, S, E), lambda i: (i, 0, 0)),     # x block
                pl.BlockSpec((E, 3 * E), lambda i: (0, 0)),        # fused Wqkv^T
                pl.BlockSpec((1, 3 * E), lambda i: (0, 0)),        # fused bias
                pl.BlockSpec((E, E), lambda i: (0, 0)),            # Wo^T
                pl.BlockSpec((1, E), lambda i: (0, 0)),            # bo
            ],
            out_specs=[
                pl.BlockSpec((Bt, S, E), lambda i: (i, 0, 0)),
                pl.BlockSpec((Bt, S, S), lambda i: (i, 0, 0)),
            ],
        ),
        compiler_params=pltpu.CompilerParams(
            dimension_semantics=("parallel",)),
    )(x, w_qkv_t, b_qkv, wo_t, bo)
    return out, attnw


def _reference(x, params):
    """Pure-JAX reference of nn.MultiheadAttention self-attention forward."""
    wq, wk, wv, bq, bk, bv, wo, bo = params
    B, S, E = x.shape
    q = x @ wq.T + bq
    k = x @ wk.T + bk
    v = x @ wv.T + bv
    q = q.reshape(B, S, NUM_HEADS, HEAD_DIM).transpose(0, 2, 1, 3)
    k = k.reshape(B, S, NUM_HEADS, HEAD_DIM).transpose(0, 2, 1, 3)
    v = v.reshape(B, S, NUM_HEADS, HEAD_DIM).transpose(0, 2, 1, 3)
    scores = jnp.einsum("bhqd,bhkd->bhqk", q, k) / math.sqrt(HEAD_DIM)
    p = jax.nn.softmax(scores, axis=-1)
    ctx = jnp.einsum("bhqk,bhkd->bhqd", p, v)
    ctx = ctx.transpose(0, 2, 1, 3).reshape(B, S, E)
    out = ctx @ wo.T + bo
    return out, p.mean(axis=1)


def init_params(key, embed_dim=EMBED_DIM):
    """Deterministic synthetic init matching nn.MultiheadAttention shapes:
       in_proj_weight (3E,E), in_proj_bias (3E,), out_proj (E,E)+(E,)."""
    k1, k2, k3, k4 = jax.random.split(key, 4)
    in_proj_w = jax.random.normal(k1, (3 * embed_dim, embed_dim), jnp.float32) * 0.1
    in_proj_b = jax.random.normal(k2, (3 * embed_dim,), jnp.float32) * 0.1
    out_w = jax.random.normal(k3, (embed_dim, embed_dim), jnp.float32) * 0.1
    out_b = jax.random.normal(k4, (embed_dim,), jnp.float32) * 0.1
    wq, wk, wv = (in_proj_w[:embed_dim],
                  in_proj_w[embed_dim:2 * embed_dim],
                  in_proj_w[2 * embed_dim:])
    bq, bk, bv = (in_proj_b[:embed_dim],
                  in_proj_b[embed_dim:2 * embed_dim],
                  in_proj_b[2 * embed_dim:])
    return (wq, wk, wv, bq, bk, bv, out_w, out_b)


if __name__ == "__main__":
    key = jax.random.PRNGKey(0)
    kx, kp = jax.random.split(key)

    B, S, E = 2, 8, EMBED_DIM
    x = jax.random.normal(kx, (B, S, E), jnp.float32)
    params = init_params(kp)
    prepared = prepare_params(params)           # one-time param prep

    out, attnw = self_attention_block(x, prepared)
    out, attnw = jax.block_until_ready((out, attnw))

    ref_out, ref_w = _reference(x, params)
    assert out.shape == (B, S, E) and attnw.shape == (B, S, S)
    assert jnp.allclose(out, ref_out, atol=1e-4, rtol=1e-4)
    assert jnp.allclose(attnw, ref_w, atol=1e-4, rtol=1e-4)

    print("KERNEL_OK")
</pallas_src>

<mosaic_0001>
module attributes {stable_mosaic.version = 11 : i64} {
  func.func @_mha_kernel(%arg0: i32, %arg1: memref<1x8x32xf32, #tpu.memory_space<vmem>>, %arg2: memref<32x96xf32, #tpu.memory_space<vmem>>, %arg3: memref<1x96xf32, #tpu.memory_space<vmem>>, %arg4: memref<32x32xf32, #tpu.memory_space<vmem>>, %arg5: memref<1x32xf32, #tpu.memory_space<vmem>>, %arg6: memref<1x8x32xf32, #tpu.memory_space<vmem>>, %arg7: memref<1x8x8xf32, #tpu.memory_space<vmem>>) attributes {dimension_semantics = [#tpu.dimension_semantics<parallel>], iteration_bounds = array<i64: 2>, scalar_prefetch = 0 : i64, scratch_operands = 0 : i64, tpu.core_type = #tpu.core_type<tc>, window_params = [{transform_indices = @transform_0, window_bounds = array<i64: 1, 8, 32>}, {pipeline_mode = #tpu.pipeline_mode<synchronous>, transform_indices = @transform_1, window_bounds = array<i64: 32, 96>}, {pipeline_mode = #tpu.pipeline_mode<synchronous>, transform_indices = @transform_2, window_bounds = array<i64: 1, 96>}, {pipeline_mode = #tpu.pipeline_mode<synchronous>, transform_indices = @transform_3, window_bounds = array<i64: 32, 32>}, {pipeline_mode = #tpu.pipeline_mode<synchronous>, transform_indices = @transform_4, window_bounds = array<i64: 1, 32>}, {transform_indices = @transform_5, window_bounds = array<i64: 1, 8, 32>}, {transform_indices = @transform_6, window_bounds = array<i64: 1, 8, 8>}]} {
    %c0 = arith.constant 0 : index
    %c0_0 = arith.constant 0 : index
    %c0_1 = arith.constant 0 : index
    %0 = vector.load %arg1[%c0, %c0_0, %c0_1] : memref<1x8x32xf32, #tpu.memory_space<vmem>>, vector<1x8x32xf32>
    %1 = vector.shape_cast %0 : vector<1x8x32xf32> to vector<8x32xf32>
    %c0_2 = arith.constant 0 : index
    %c0_3 = arith.constant 0 : index
    %2 = vector.load %arg2[%c0_2, %c0_3] : memref<32x96xf32, #tpu.memory_space<vmem>>, vector<32x96xf32>
    %cst = arith.constant dense<0.000000e+00> : vector<8x96xf32>
    %3 = tpu.matmul %1, %2, %cst {dimension_numbers = #tpu.dot_dimension_numbers<[1], [0], [0], [1], [0, 0, 1, 1], [], []>} : vector<8x32xf32>, vector<32x96xf32>, vector<8x96xf32> -> vector<8x96xf32>
    %c0_4 = arith.constant 0 : index
    %c0_5 = arith.constant 0 : index
    %4 = vector.load %arg3[%c0_4, %c0_5] : memref<1x96xf32, #tpu.memory_space<vmem>>, vector<1x96xf32>
    %5 = vector.broadcast %4 : vector<1x96xf32> to vector<8x96xf32>
    %6 = arith.addf %3, %5 : vector<8x96xf32>
    %cst_6 = arith.constant 0.000000e+00 : f32
    %7 = vector.broadcast %cst_6 : f32 to vector<8x8xf32>
    %cst_7 = arith.constant 0.000000e+00 : f32
    %8 = vector.broadcast %cst_7 : f32 to vector<8x32xf32>
    %9 = vector.extract_strided_slice %6 {offsets = [0, 0], sizes = [8, 16], strides = [1, 1]} : vector<8x96xf32> to vector<8x16xf32>
    %10 = vector.extract_strided_slice %6 {offsets = [0, 32], sizes = [8, 16], strides = [1, 1]} : vector<8x96xf32> to vector<8x16xf32>
    %11 = vector.extract_strided_slice %6 {offsets = [0, 64], sizes = [8, 16], strides = [1, 1]} : vector<8x96xf32> to vector<8x16xf32>
    %cst_8 = arith.constant dense<0.000000e+00> : vector<8x8xf32>
    %12 = tpu.matmul %9, %10, %cst_8 {dimension_numbers = #tpu.dot_dimension_numbers<[1], [1], [0], [0], [0, 0, 1, 0], [], []>} : vector<8x16xf32>, vector<8x16xf32>, vector<8x8xf32> -> vector<8x8xf32>
    %cst_9 = arith.constant dense<0xFF800000> : vector<8xf32>
    %13 = vector.multi_reduction <maximumf>, %12, %cst_9 [1] : vector<8x8xf32> to vector<8xf32>
    %14 = vector.shape_cast %13 : vector<8xf32> to vector<8x1xf32>
    %15 = vector.broadcast %14 : vector<8x1xf32> to vector<8x8xf32>
    %16 = arith.subf %12, %15 : vector<8x8xf32>
    %17 = math.exp %16 : vector<8x8xf32>
    %cst_10 = arith.constant dense<0.000000e+00> : vector<8xf32>
    %18 = vector.multi_reduction <add>, %17, %cst_10 [1] : vector<8x8xf32> to vector<8xf32>
    %19 = vector.shape_cast %18 : vector<8xf32> to vector<8x1xf32>
    %20 = tpu.reciprocal %19 : vector<8x1xf32> -> vector<8x1xf32>
    %21 = vector.broadcast %20 : vector<8x1xf32> to vector<8x8xf32>
    %22 = arith.mulf %17, %21 : vector<8x8xf32>
    %23 = arith.addf %7, %22 : vector<8x8xf32>
    %cst_11 = arith.constant dense<0.000000e+00> : vector<8x16xf32>
    %24 = tpu.matmul %22, %11, %cst_11 {dimension_numbers = #tpu.dot_dimension_numbers<[1], [0], [0], [1], [0, 0, 1, 1], [], []>} : vector<8x8xf32>, vector<8x16xf32>, vector<8x16xf32> -> vector<8x16xf32>
    %c0_12 = arith.constant 0 : index
    %c0_13 = arith.constant 0 : index
    %25 = vector.load %arg4[%c0_12, %c0_13] : memref<32x32xf32, #tpu.memory_space<vmem>>, vector<16x32xf32>
    %cst_14 = arith.constant dense<0.000000e+00> : vector<8x32xf32>
    %26 = tpu.matmul %24, %25, %cst_14 {dimension_numbers = #tpu.dot_dimension_numbers<[1], [0], [0], [1], [0, 0, 1, 1], [], []>} : vector<8x16xf32>, vector<16x32xf32>, vector<8x32xf32> -> vector<8x32xf32>
    %27 = arith.addf %8, %26 : vector<8x32xf32>
    %28 = vector.extract_strided_slice %6 {offsets = [0, 16], sizes = [8, 16], strides = [1, 1]} : vector<8x96xf32> to vector<8x16xf32>
    %29 = vector.extract_strided_slice %6 {offsets = [0, 48], sizes = [8, 16], strides = [1, 1]} : vector<8x96xf32> to vector<8x16xf32>
    %30 = vector.extract_strided_slice %6 {offsets = [0, 80], sizes = [8, 16], strides = [1, 1]} : vector<8x96xf32> to vector<8x16xf32>
    %cst_15 = arith.constant dense<0.000000e+00> : vector<8x8xf32>
    %31 = tpu.matmul %28, %29, %cst_15 {dimension_numbers = #tpu.dot_dimension_numbers<[1], [1], [0], [0], [0, 0, 1, 0], [], []>} : vector<8x16xf32>, vector<8x16xf32>, vector<8x8xf32> -> vector<8x8xf32>
    %cst_16 = arith.constant dense<0xFF800000> : vector<8xf32>
    %32 = vector.multi_reduction <maximumf>, %31, %cst_16 [1] : vector<8x8xf32> to vector<8xf32>
    %33 = vector.shape_cast %32 : vector<8xf32> to vector<8x1xf32>
    %34 = vector.broadcast %33 : vector<8x1xf32> to vector<8x8xf32>
    %35 = arith.subf %31, %34 : vector<8x8xf32>
    %36 = math.exp %35 : vector<8x8xf32>
    %cst_17 = arith.constant dense<0.000000e+00> : vector<8xf32>
    %37 = vector.multi_reduction <add>, %36, %cst_17 [1] : vector<8x8xf32> to vector<8xf32>
    %38 = vector.shape_cast %37 : vector<8xf32> to vector<8x1xf32>
    %39 = tpu.reciprocal %38 : vector<8x1xf32> -> vector<8x1xf32>
    %40 = vector.broadcast %39 : vector<8x1xf32> to vector<8x8xf32>
    %41 = arith.mulf %36, %40 : vector<8x8xf32>
    %42 = arith.addf %23, %41 : vector<8x8xf32>
    %cst_18 = arith.constant dense<0.000000e+00> : vector<8x16xf32>
    %43 = tpu.matmul %41, %30, %cst_18 {dimension_numbers = #tpu.dot_dimension_numbers<[1], [0], [0], [1], [0, 0, 1, 1], [], []>} : vector<8x8xf32>, vector<8x16xf32>, vector<8x16xf32> -> vector<8x16xf32>
    %c16 = arith.constant 16 : index
    %c0_19 = arith.constant 0 : index
    %44 = vector.load %arg4[%c16, %c0_19] : memref<32x32xf32, #tpu.memory_space<vmem>>, vector<16x32xf32>
    %cst_20 = arith.constant dense<0.000000e+00> : vector<8x32xf32>
    %45 = tpu.matmul %43, %44, %cst_20 {dimension_numbers = #tpu.dot_dimension_numbers<[1], [0], [0], [1], [0, 0, 1, 1], [], []>} : vector<8x16xf32>, vector<16x32xf32>, vector<8x32xf32> -> vector<8x32xf32>
    %46 = arith.addf %27, %45 : vector<8x32xf32>
    %c0_21 = arith.constant 0 : index
    %c0_22 = arith.constant 0 : index
    %47 = vector.load %arg5[%c0_21, %c0_22] : memref<1x32xf32, #tpu.memory_space<vmem>>, vector<1x32xf32>
    %48 = vector.broadcast %47 : vector<1x32xf32> to vector<8x32xf32>
    %49 = arith.addf %46, %48 : vector<8x32xf32>
    %c0_23 = arith.constant 0 : index
    %c0_24 = arith.constant 0 : index
    %c0_25 = arith.constant 0 : index
    %50 = vector.load %arg6[%c0_23, %c0_24, %c0_25] : memref<1x8x32xf32, #tpu.memory_space<vmem>>, vector<1x8x32xf32>
    %51 = vector.shape_cast %50 : vector<1x8x32xf32> to vector<8x32xf32>
    %52 = vector.shape_cast %49 : vector<8x32xf32> to vector<1x8x32xf32>
    tpu.vector_store %arg6[%c0_23, %c0_24, %c0_25], %52 {strides = array<i32>} : memref<1x8x32xf32, #tpu.memory_space<vmem>>, vector<1x8x32xf32>,
    %cst_26 = arith.constant 5.000000e-01 : f32
    %53 = vector.broadcast %cst_26 : f32 to vector<8x8xf32>
    %54 = arith.mulf %42, %53 : vector<8x8xf32>
    %c0_27 = arith.constant 0 : index
    %c0_28 = arith.constant 0 : index
    %c0_29 = arith.constant 0 : index
    %55 = vector.load %arg7[%c0_27, %c0_28, %c0_29] : memref<1x8x8xf32, #tpu.memory_space<vmem>>, vector<1x8x8xf32>
    %56 = vector.shape_cast %55 : vector<1x8x8xf32> to vector<8x8xf32>
    %57 = vector.shape_cast %54 : vector<8x8xf32> to vector<1x8x8xf32>
    tpu.vector_store %arg7[%c0_27, %c0_28, %c0_29], %57 {strides = array<i32>} : memref<1x8x8xf32, #tpu.memory_space<vmem>>, vector<1x8x8xf32>,
    return
  }
  func.func @transform_0(%arg0: i32) -> (i32, i32, i32) {
    %c0_i32 = arith.constant 0 : i32
    %c0_i32_0 = arith.constant 0 : i32
    %c0_i32_1 = arith.constant 0 : i32
    return %arg0, %c0_i32, %c0_i32_0 : i32, i32, i32
  }
  func.func @transform_1(%arg0: i32) -> (i32, i32) {
    %c0_i32 = arith.constant 0 : i32
    %c0_i32_0 = arith.constant 0 : i32
    %c0_i32_1 = arith.constant 0 : i32
    return %c0_i32, %c0_i32_0 : i32, i32
  }
  func.func @transform_2(%arg0: i32) -> (i32, i32) {
    %c0_i32 = arith.constant 0 : i32
    %c0_i32_0 = arith.constant 0 : i32
    %c0_i32_1 = arith.constant 0 : i32
    return %c0_i32, %c0_i32_0 : i32, i32
  }
  func.func @transform_3(%arg0: i32) -> (i32, i32) {
    %c0_i32 = arith.constant 0 : i32
    %c0_i32_0 = arith.constant 0 : i32
    %c0_i32_1 = arith.constant 0 : i32
    return %c0_i32, %c0_i32_0 : i32, i32
  }
  func.func @transform_4(%arg0: i32) -> (i32, i32) {
    %c0_i32 = arith.constant 0 : i32
    %c0_i32_0 = arith.constant 0 : i32
    %c0_i32_1 = arith.constant 0 : i32
    return %c0_i32, %c0_i32_0 : i32, i32
  }
  func.func @transform_5(%arg0: i32) -> (i32, i32, i32) {
    %c0_i32 = arith.constant 0 : i32
    %c0_i32_0 = arith.constant 0 : i32
    %c0_i32_1 = arith.constant 0 : i32
    return %arg0, %c0_i32, %c0_i32_0 : i32, i32, i32
  }
  func.func @transform_6(%arg0: i32) -> (i32, i32, i32) {
    %c0_i32 = arith.constant 0 : i32
    %c0_i32_0 = arith.constant 0 : i32
    %c0_i32_1 = arith.constant 0 : i32
    return %arg0, %c0_i32, %c0_i32_0 : i32, i32, i32
  }
}

</mosaic_0001>

<llo_original>
// kernel: tpu_custom_call.1
$region0: #{tpu_custom_call.1}
  #allocation0 [shape = 'u32[]', space=smem, size = 0x4, offset = 0x4, fixed_abs, tag = 'smem constant byte address 0x4 - core index']
  #allocation1 [shape = 'u32[144,128]{1,0:T(1,128)}', space=vmem, size = 0x12000, scoped, tag = 'internal scratch']
  %s0 = inlined_call_operand.hbm [shape: f32[2,8,32], index: 0, kind: input, shape index: {}]
  %s1 = inlined_call_operand.hbm [shape: f32[32,96], index: 1, kind: input, shape index: {}]
  %s2 = inlined_call_operand.vmem [shape: f32[1,96], index: 2, kind: input, shape index: {}]
  %s3 = inlined_call_operand.hbm [shape: f32[32,32], index: 3, kind: input, shape index: {}]
  %s4 = inlined_call_operand.vmem [shape: f32[1,32], index: 4, kind: input, shape index: {}]
  %s5 = inlined_call_operand.hbm [shape: f32[2,8,32], index: 5, kind: output, shape index: {0}]
  %s6 = inlined_call_operand.hbm [shape: f32[2,8,8], index: 6, kind: output, shape index: {1}]
  %7 = xla_tuple %s5, %s6
  %s8 = sld [smem:[#allocation0]]
  $region73: #{tpu_custom_call.1} parent=0
    _
  %s10 = ssub.s32 1, %s8
  %s11 = scalar_select 0, %s10, %s8
  $region1: #{tpu_custom_call.1} parent=0
    #allocation2 [shape = 'u8[8192]{0}', space=vmem, size = 0x2000, scoped, tag = 'input window, operand 0']
    #allocation3 [shape = 's32[2]{0}', space=sflag, size = 0x8, scoped, tag = 'scoped memory for tpu_custom_call.1']
    #allocation4 [shape = 's32[2]{0}', space=sflag, size = 0x8, scoped, tag = 'scoped memory for tpu_custom_call.1']
    #allocation5 [shape = 'u8[16384]{0}', space=vmem, size = 0x4000, scoped, tag = 'input window, operand 1, single buffered']
    #allocation6 [shape = 's32[1]{0}', space=sflag, size = 0x4, scoped, tag = 'scoped memory for tpu_custom_call.1']
    #allocation7 [shape = 'u8[16384]{0}', space=vmem, size = 0x4000, scoped, tag = 'input window, operand 3, single buffered']
    #allocation8 [shape = 'u8[8192]{0}', space=vmem, size = 0x2000, scoped, tag = 'output window, operand 0']
    #allocation9 [shape = 'u8[8192]{0}', space=vmem, size = 0x2000, scoped, tag = 'output window, operand 1']
    #allocation10 [shape = 's32[2]{0}', space=sflag, size = 0x8, scoped, tag = 'scoped memory for tpu_custom_call.1']
    %12 = vsyncpa [#allocation3], 0
    %s13 = scalar_lea.sflag [#allocation3], 1
    %14 = vsyncpa %s13, 0
    %15 = vsyncpa [#allocation6], 0
    %16 = vsyncpa [#allocation4], 0
    %s17 = scalar_lea.sflag [#allocation4], 1
    %18 = vsyncpa %s17, 0
    %19 = vsyncpa [#allocation10], 0
    %s20 = scalar_lea.sflag [#allocation10], 1
    %21 = vsyncpa %s20, 0
    loop: start=0, step=1, limit=4
    $region2: #{tpu_custom_call.1} parent=1 // loop_pre_header
      _
    $region3: #{tpu_custom_call.1} parent=1 // loop_header
      %s23 = sphi 0, %s27
      %p24 = scmp.ge.s32.totalorder %s23, 4
      %s33 = sphi 0, %s35
      %s36 = sphi 0, %s33
      %s37 = sphi 0, %s36
      %s53 = sphi 0, %s37
      %s57 = sphi 0, %s57
      %s59 = sphi 0, %s57
      %s60 = sphi 0, %s59
      %s74 = sphi 0, %s60
      %s78 = sphi 0, %s78
      %s80 = sphi 0, %s78
      %s81 = sphi 0, %s80
      %s95 = sphi 0, %s81
      %s99 = sphi 0, %s99
      %s101 = sphi 0, %s99
      %s102 = sphi 0, %s101
      %s116 = sphi 0, %s102
      %s120 = sphi 0, %s120
      %s122 = sphi 0, %s120
      %s123 = sphi 0, %s122
      %s137 = sphi 0, %s123
      %s143 = sphi 0, %s145
      %s146 = sphi 0, %s143
      %s147 = sphi 0, %s146
      %s163 = sphi 0, %s147
      %s169 = sphi 0, %s171
      %s172 = sphi 0, %s169
      %s173 = sphi 0, %s172
      %s189 = sphi 0, %s173
    $region4: #{tpu_custom_call.1} parent=1 // loop_header_branch
      %26 = sbr.rel (%p24) target = $region8
    $region5: #{tpu_custom_call.1} parent=1 // loop_body
      %s28 = ssub.s32 %s23, 1
      %s29 = ssub.s32 %s23, 2
      %s30 = sadd.s32 %s23, 1
      %s31 = ssub.s32 %s23, %s30
      %p32 = scmp.eq.s32.totalorder %s31, 0
      %s34 = sadd.s32 %s33, 1
      %s35 = scalar_select %p32, %s33, %s34
      %p38 = pneg %p32
      %p39 = scmp.eq.s32.totalorder %s23, 1
      %p40 = por %p38, %p39
      %p41 = scmp.ne.s32.totalorder %s33, %s36
      %p42 = scmp.eq.s32.totalorder %s23, 0
      %p43 = por %p41, %p42
      %p44 = scmp.ne.s32.totalorder %s33, %s36
      %p45 = scmp.eq.s32.totalorder %s28, 1
      %p46 = por %p44, %p45
      %p47 = scmp.ne.s32.totalorder %s36, %s37
      %p48 = scmp.eq.s32.totalorder %s28, 0
      %p49 = por %p47, %p48
      %p50 = scmp.ne.s32.totalorder %s36, %s37
      %p51 = scmp.eq.s32.totalorder %s29, 1
      %p52 = por %p50, %p51
      %p54 = scmp.ne.s32.totalorder %s37, %s53
      %p55 = scmp.eq.s32.totalorder %s29, 0
      %p56 = por %p54, %p55
      %s58 = sadd.s32 %s57, 1
      %p61 = scmp.eq.s32.totalorder %s23, 1
      %p62 = scmp.ne.s32.totalorder %s57, %s59
      %p63 = scmp.eq.s32.totalorder %s23, 0
      %p64 = por %p62, %p63
      %p65 = scmp.ne.s32.totalorder %s57, %s59
      %p66 = scmp.eq.s32.totalorder %s28, 1
      %p67 = por %p65, %p66
      %p68 = scmp.ne.s32.totalorder %s59, %s60
      %p69 = scmp.eq.s32.totalorder %s28, 0
      %p70 = por %p68, %p69
      %p71 = scmp.ne.s32.totalorder %s59, %s60
      %p72 = scmp.eq.s32.totalorder %s29, 1
      %p73 = por %p71, %p72
      %p75 = scmp.ne.s32.totalorder %s60, %s74
      %p76 = scmp.eq.s32.totalorder %s29, 0
      %p77 = por %p75, %p76
      %s79 = sadd.s32 %s78, 1
      %p82 = scmp.eq.s32.totalorder %s23, 1
      %p83 = scmp.ne.s32.totalorder %s78, %s80
      %p84 = scmp.eq.s32.totalorder %s23, 0
      %p85 = por %p83, %p84
      %p86 = scmp.ne.s32.totalorder %s78, %s80
      %p87 = scmp.eq.s32.totalorder %s28, 1
      %p88 = por %p86, %p87
      %p89 = scmp.ne.s32.totalorder %s80, %s81
      %p90 = scmp.eq.s32.totalorder %s28, 0
      %p91 = por %p89, %p90
      %p92 = scmp.ne.s32.totalorder %s80, %s81
      %p93 = scmp.eq.s32.totalorder %s29, 1
      %p94 = por %p92, %p93
      %p96 = scmp.ne.s32.totalorder %s81, %s95
      %p97 = scmp.eq.s32.totalorder %s29, 0
      %p98 = por %p96, %p97
      %s100 = sadd.s32 %s99, 1
      %p103 = scmp.eq.s32.totalorder %s23, 1
      %p104 = scmp.ne.s32.totalorder %s99, %s101
      %p105 = scmp.eq.s32.totalorder %s23, 0
      %p106 = por %p104, %p105
      %p107 = scmp.ne.s32.totalorder %s99, %s101
      %p108 = scmp.eq.s32.totalorder %s28, 1
      %p109 = por %p107, %p108
      %p110 = scmp.ne.s32.totalorder %s101, %s102
      %p111 = scmp.eq.s32.totalorder %s28, 0
      %p112 = por %p110, %p111
      %p113 = scmp.ne.s32.totalorder %s101, %s102
      %p114 = scmp.eq.s32.totalorder %s29, 1
      %p115 = por %p113, %p114
      %p117 = scmp.ne.s32.totalorder %s102, %s116
      %p118 = scmp.eq.s32.totalorder %s29, 0
      %p119 = por %p117, %p118
      %s121 = sadd.s32 %s120, 1
      %p124 = scmp.eq.s32.totalorder %s23, 1
      %p125 = scmp.ne.s32.totalorder %s120, %s122
      %p126 = scmp.eq.s32.totalorder %s23, 0
      %p127 = por %p125, %p126
      %p128 = scmp.ne.s32.totalorder %s120, %s122
      %p129 = scmp.eq.s32.totalorder %s28, 1
      %p130 = por %p128, %p129
      %p131 = scmp.ne.s32.totalorder %s122, %s123
      %p132 = scmp.eq.s32.totalorder %s28, 0
      %p133 = por %p131, %p132
      %p134 = scmp.ne.s32.totalorder %s122, %s123
      %p135 = scmp.eq.s32.totalorder %s29, 1
      %p136 = por %p134, %p135
      %p138 = scmp.ne.s32.totalorder %s123, %s137
      %p139 = scmp.eq.s32.totalorder %s29, 0
      %p140 = por %p138, %p139
      %s141 = ssub.s32 %s23, %s30
      %p142 = scmp.eq.s32.totalorder %s141, 0
      %s144 = sadd.s32 %s143, 1
      %s145 = scalar_select %p142, %s143, %s144
      %p148 = pneg %p142
      %p149 = scmp.eq.s32.totalorder %s23, 1
      %p150 = por %p148, %p149
      %p151 = scmp.ne.s32.totalorder %s143, %s146
      %p152 = scmp.eq.s32.totalorder %s23, 0
      %p153 = por %p151, %p152
      %p154 = scmp.ne.s32.totalorder %s143, %s146
      %p155 = scmp.eq.s32.totalorder %s28, 1
      %p156 = por %p154, %p155
      %p157 = scmp.ne.s32.totalorder %s146, %s147
      %p158 = scmp.eq.s32.totalorder %s28, 0
      %p159 = por %p157, %p158
      %p160 = scmp.ne.s32.totalorder %s146, %s147
      %p161 = scmp.eq.s32.totalorder %s29, 1
      %p162 = por %p160, %p161
      %p164 = scmp.ne.s32.totalorder %s147, %s163
      %p165 = scmp.eq.s32.totalorder %s29, 0
      %p166 = por %p164, %p165
      %s167 = ssub.s32 %s23, %s30
      %p168 = scmp.eq.s32.totalorder %s167, 0
      %s170 = sadd.s32 %s169, 1
      %s171 = scalar_select %p168, %s169, %s170
      %p174 = pneg %p168
      %p175 = scmp.eq.s32.totalorder %s23, 1
      %p176 = por %p174, %p175
      %p177 = scmp.ne.s32.totalorder %s169, %s172
      %p178 = scmp.eq.s32.totalorder %s23, 0
      %p179 = por %p177, %p178
      %p180 = scmp.ne.s32.totalorder %s169, %s172
      %p181 = scmp.eq.s32.totalorder %s28, 1
      %p182 = por %p180, %p181
      %p183 = scmp.ne.s32.totalorder %s172, %s173
      %p184 = scmp.eq.s32.totalorder %s28, 0
      %p185 = por %p183, %p184
      %p186 = scmp.ne.s32.totalorder %s172, %s173
      %p187 = scmp.eq.s32.totalorder %s29, 1
      %p188 = por %p186, %p187
      %p190 = scmp.ne.s32.totalorder %s173, %s189
      %p191 = scmp.eq.s32.totalorder %s29, 0
      %p192 = por %p190, %p191
      %p193 = scmp.le.s32.totalorder 1, %s23
      %p194 = scmp.lt.s32.totalorder %s23, 3
      %p195 = pnand %p193, %p194
      %p196 = pneg %p195
      // Predicated region
      $region9: #{tpu_custom_call.1} parent=5 // pred_check
        _
      $region10: #{tpu_custom_call.1} parent=5 // pred_check_branch
        %198 = sbr.rel (%p195) target = $region12
      $region11: #{tpu_custom_call.1} parent=5 // pred_region
        %s199 = ssub.s32 %s23, 1
        // Predicated region
        $region13: #{tpu_custom_call.1} parent=11 // pred_check
          %p200 = pneg %p70
        $region14: #{tpu_custom_call.1} parent=11 // pred_check_branch
          %202 = sbr.rel (%p200) target = $region16
        $region15: #{tpu_custom_call.1} parent=11 // pred_region
          %s204 = ssub.s32 512, 512
          %205 = vsyncadd [#allocation6], %s204
          %s206 = sshll.u32 [#allocation5], 4
          %s207 = int_to_ptr.vmem [resolvable:$true] %s206
          %212 = dma.hbm_to_vmem [thread:$0]  %s1, 512, %s207, [#allocation6], 128, 128, 8
        $region16: #{tpu_custom_call.1} parent=11 // pred_fallthru
          _
        // Predicated region
        $region17: #{tpu_custom_call.1} parent=11 // pred_check
          %p213 = pneg %p91
        $region18: #{tpu_custom_call.1} parent=11 // pred_check_branch
          %215 = sbr.rel (%p213) target = $region20
        $region19: #{tpu_custom_call.1} parent=11 // pred_region
          _
        $region20: #{tpu_custom_call.1} parent=11 // pred_fallthru
          _
        // Predicated region
        $region21: #{tpu_custom_call.1} parent=11 // pred_check
          %p216 = pneg %p112
        $region22: #{tpu_custom_call.1} parent=11 // pred_check_branch
          %218 = sbr.rel (%p216) target = $region24
        $region23: #{tpu_custom_call.1} parent=11 // pred_region
          %s220 = ssub.s32 512, 512
          %221 = vsyncadd [#allocation6], %s220
          %s222 = sshll.u32 [#allocation7], 4
          %s223 = int_to_ptr.vmem [resolvable:$true] %s222
          %228 = dma.hbm_to_vmem [thread:$0]  %s3, 512, %s223, [#allocation6], 128, 128, 8
        $region24: #{tpu_custom_call.1} parent=11 // pred_fallthru
          _
        // Predicated region
        $region25: #{tpu_custom_call.1} parent=11 // pred_check
          %p229 = pneg %p133
        $region26: #{tpu_custom_call.1} parent=11 // pred_check_branch
          %231 = sbr.rel (%p229) target = $region28
        $region27: #{tpu_custom_call.1} parent=11 // pred_region
          _
        $region28: #{tpu_custom_call.1} parent=11 // pred_fallthru
          _
      $region12: #{tpu_custom_call.1} parent=5 // pred_fallthru
        _
      %p232 = scmp.lt.s32.totalorder %s23, 2
      // Predicated region
      $region29: #{tpu_custom_call.1} parent=5 // pred_check
        %p233 = pneg %p232
      $region30: #{tpu_custom_call.1} parent=5 // pred_check_branch
        %235 = sbr.rel (%p233) target = $region32
      $region31: #{tpu_custom_call.1} parent=5 // pred_region
        // Predicated region
        $region33: #{tpu_custom_call.1} parent=31 // pred_check
          %p236 = pneg %p43
        $region34: #{tpu_custom_call.1} parent=31 // pred_check_branch
          %238 = sbr.rel (%p236) target = $region36
        $region35: #{tpu_custom_call.1} parent=31 // pred_region
          %s239 = sand.u32 %s33, 1
          %s240 = scalar_lea.sflag [#allocation3], %s239
          %s241 = sand.u32 %s33, 1
          %s242 = smul.addr %s241, 8
          %s243 = scalar_lea.vmem [#allocation2], %s242
          %s245 = ssub.s32 128, 128
          %246 = vsyncadd %s240, %s245
          %s247 = smul.addr %s23, 128
          %s248 = scalar_lea.hbm %s0, %s247
          %s250 = sshll.u32 %s243, 4
          %s251 = int_to_ptr.vmem [resolvable:$true] %s250
          %253 = dma.hbm_to_vmem [thread:$0]  %s248, 128, %s251, %s240
        $region36: #{tpu_custom_call.1} parent=31 // pred_fallthru
          _
      $region32: #{tpu_custom_call.1} parent=5 // pred_fallthru
        _
      %p254 = scmp.le.s32.totalorder 1, %s23
      %p255 = scmp.lt.s32.totalorder %s23, 3
      %p256 = pnand %p254, %p255
      %p257 = pneg %p256
      // Predicated region
      $region37: #{tpu_custom_call.1} parent=5 // pred_check
        _
      $region38: #{tpu_custom_call.1} parent=5 // pred_check_branch
        %259 = sbr.rel (%p256) target = $region40
      $region39: #{tpu_custom_call.1} parent=5 // pred_region
        %s260 = ssub.s32 %s23, 1
        %s261 = sand.u32 %s36, 1
        %s262 = scalar_lea.sflag [#allocation3], %s261
        %s263 = sand.u32 %s36, 1
        %s264 = smul.addr %s263, 8
        %s265 = scalar_lea.vmem [#allocation2], %s264
        // Predicated region
        $region41: #{tpu_custom_call.1} parent=39 // pred_check
          %p266 = pneg %p49
        $region42: #{tpu_custom_call.1} parent=39 // pred_check_branch
          %268 = sbr.rel (%p266) target = $region44
        $region43: #{tpu_custom_call.1} parent=39 // pred_region
          %269 = dma.done %s262, 128
        $region44: #{tpu_custom_call.1} parent=39 // pred_fallthru
          _
        // Predicated region
        $region45: #{tpu_custom_call.1} parent=39 // pred_check
          %p270 = pneg %p70
        $region46: #{tpu_custom_call.1} parent=39 // pred_check_branch
          %272 = sbr.rel (%p270) target = $region48
        $region47: #{tpu_custom_call.1} parent=39 // pred_region
          %273 = dma.done [#allocation6], 512
        $region48: #{tpu_custom_call.1} parent=39 // pred_fallthru
          _
        // Predicated region
        $region49: #{tpu_custom_call.1} parent=39 // pred_check
          %p274 = pneg %p112
        $region50: #{tpu_custom_call.1} parent=39 // pred_check_branch
          %276 = sbr.rel (%p274) target = $region52
        $region51: #{tpu_custom_call.1} parent=39 // pred_region
          %277 = dma.done [#allocation6], 512
        $region52: #{tpu_custom_call.1} parent=39 // pred_fallthru
          _
        %s278 = sand.u32 %s36, 1
        %s279 = scalar_lea.sflag [#allocation3], %s278
        %s280 = sand.u32 %s36, 1
        %s281 = smul.addr %s280, 8
        %s282 = scalar_lea.vmem [#allocation2], %s281
        %p283 = pneg %p49
        %p284 = pneg %p46
        %p285 = pneg %p70
        %p286 = pneg %p67
        %p287 = pneg %p91
        %p288 = pneg %p88
        %p289 = pneg %p112
        %p290 = pneg %p109
        %p291 = pneg %p133
        %p292 = pneg %p130
        %p293 = pneg %p159
        %p294 = pneg %p156
        %s295 = sand.u32 %s146, 1
        %s296 = scalar_lea.sflag [#allocation4], %s295
        %s297 = sand.u32 %s146, 1
        %s298 = smul.addr %s297, 8
        %s299 = scalar_lea.vmem [#allocation8], %s298
        %p300 = pneg %p185
        %p301 = pneg %p182
        %s302 = sand.u32 %s172, 1
        %s303 = scalar_lea.sflag [#allocation10], %s302
        %s304 = sand.u32 %s172, 1
        %s305 = smul.addr %s304, 8
        %s306 = scalar_lea.vmem [#allocation9], %s305
        %v307 = vld [vmem:[%s265] sm:$0xff]
        %v308 = vld [vmem:[#allocation5] sm:$0xff]
        %v309 = vld [vmem:[#allocation5 + $0x8] sm:$0xff]
        %v310 = vld [vmem:[#allocation5 + $0x10] sm:$0xff]
        %v311 = vld [vmem:[#allocation5 + $0x18] sm:$0xff]
        %v312 = vld [vmem:[%s2] sm:$0x1]
        %v314 = vlaneseq
        %v315 = vshrl.u32 %v314, 7
        %v316 = vsub.s32 0, %v315
        %v317 = vrot.slane %v312, %v316
        %vm319 = vcmask 261120
        %v321 = vsel %vm319, %v307, 0
        %323 = vmatprep.subr.mxu0 0.0
        %324 = vmatpush1.msra.mxu0 0.0
        %325 = vmatprep.subr.mxu0 0.0
        %326 = vmatpush1.msra.mxu0 0.0
        %327 = vmatprep.subr.mxu0 0.0
        %328 = vmatpush1.msra.mxu0 0.0
        %329 = vmatprep.subr.mxu0 0.0
        %330 = vmatpush1.msra.mxu0 0.0
        %331 = vmatprep.subr.mxu0 0.0
        %332 = vmatpush1.msra.mxu0 0.0
        %333 = vmatprep.subr.mxu0 0.0
        %334 = vmatpush1.msra.mxu0 0.0
        %335 = vmatprep.subr.mxu0 0.0
        %336 = vmatpush1.msra.mxu0 0.0
        %337 = vmatprep.subr.mxu0 0.0
        %338 = vmatpush1.msra.mxu0 0.0
        %339 = vmatprep.subr.mxu0 0.0
        %340 = vmatpush1.msra.mxu0 0.0
        %341 = vmatprep.subr.mxu0 0.0
        %342 = vmatpush1.msra.mxu0 0.0
        %343 = vmatprep.subr.mxu0 0.0
        %344 = vmatpush1.msra.mxu0 0.0
        %345 = vmatprep.subr.mxu0 0.0
        %346 = vmatpush1.msra.mxu0 0.0
        %347 = vmatprep.subr.mxu0 0.0
        %348 = vmatpush1.msra.mxu0 %v311
        %349 = vmatprep.subr.mxu0 0.0
        %350 = vmatpush1.msra.mxu0 %v310
        %351 = vmatprep.subr.mxu0 0.0
        %352 = vmatpush1.msra.mxu0 %v309
        %353 = vmatprep.subr.mxu0 0.0
        %354 = vmatpush1.msra.mxu0 %v308
        %355 = vmatprep.subr.mxu0 0.0
        %356 = vmatpush2.msra.mxu0 0.0
        %357 = vmatprep.subr.mxu0 0.0
        %358 = vmatpush2.msra.mxu0 0.0
        %359 = vmatprep.subr.mxu0 0.0
        %360 = vmatpush2.msra.mxu0 0.0
        %361 = vmatprep.subr.mxu0 0.0
        %362 = vmatpush2.msra.mxu0 0.0
        %363 = vmatprep.subr.mxu0 0.0
        %364 = vmatpush2.msra.mxu0 0.0
        %365 = vmatprep.subr.mxu0 0.0
        %366 = vmatpush2.msra.mxu0 0.0
        %367 = vmatprep.subr.mxu0 0.0
        %368 = vmatpush2.msra.mxu0 0.0
        %369 = vmatprep.subr.mxu0 0.0
        %370 = vmatpush2.msra.mxu0 0.0
        %371 = vmatprep.subr.mxu0 0.0
        %372 = vmatpush2.msra.mxu0 0.0
        %373 = vmatprep.subr.mxu0 0.0
        %374 = vmatpush2.msra.mxu0 0.0
        %375 = vmatprep.subr.mxu0 0.0
        %376 = vmatpush2.msra.mxu0 0.0
        %377 = vmatprep.subr.mxu0 0.0
        %378 = vmatpush2.msra.mxu0 0.0
        %379 = vmatprep.subr.mxu0 0.0
        %380 = vmatpush2.msra.mxu0 0.0
        %381 = vmatprep.subr.mxu0 0.0
        %382 = vmatpush2.msra.mxu0 0.0
        %383 = vmatprep.subr.mxu0 0.0
        %384 = vmatpush2.msra.mxu0 0.0
        %385 = vmatprep.subr.mxu0 0.0
        %386 = vmatpush2.msra.mxu0 0.0
        %387 = vmatprep.mubr.f32.mxu0 0.0
        %388 = vmatmul.mubr.f32.gmra.mxu0 %v321
        %v389 = vpop.f32.mrf.mxu0
        %v390 = vadd.f32 %v317, %v389
        %v391 = vpop.f32.mrf.mxu0
        %392 = vdwg.mxu0
        %394 = vrot.lane.b32.xlu0 %v390, 96
        %v395 = vpop.permute.xlu0 %394
        %vm396 = vcmask 130048
        %v397 = vsel %vm396, %v390, 0
        %v399 = vsel %vm396, %v395, 0
        %401 = vmatprep.subr.mxu0 0.0
        %402 = vmatpush1.xpose.msra.mxu0 0.0
        %403 = vmatprep.subr.mxu0 0.0
        %404 = vmatpush1.xpose.msra.mxu0 0.0
        %405 = vmatprep.subr.mxu0 0.0
        %406 = vmatpush1.xpose.msra.mxu0 0.0
        %407 = vmatprep.subr.mxu0 0.0
        %408 = vmatpush1.xpose.msra.mxu0 0.0
        %409 = vmatprep.subr.mxu0 0.0
        %410 = vmatpush1.xpose.msra.mxu0 0.0
        %411 = vmatprep.subr.mxu0 0.0
        %412 = vmatpush1.xpose.msra.mxu0 0.0
        %413 = vmatprep.subr.mxu0 0.0
        %414 = vmatpush1.xpose.msra.mxu0 0.0
        %415 = vmatprep.subr.mxu0 0.0
        %416 = vmatpush1.xpose.msra.mxu0 0.0
        %417 = vmatprep.subr.mxu0 0.0
        %418 = vmatpush1.xpose.msra.mxu0 0.0
        %419 = vmatprep.subr.mxu0 0.0
        %420 = vmatpush1.xpose.msra.mxu0 0.0
        %421 = vmatprep.subr.mxu0 0.0
        %422 = vmatpush1.xpose.msra.mxu0 0.0
        %423 = vmatprep.subr.mxu0 0.0
        %424 = vmatpush1.xpose.msra.mxu0 0.0
        %425 = vmatprep.subr.mxu0 0.0
        %426 = vmatpush1.xpose.msra.mxu0 0.0
        %427 = vmatprep.subr.mxu0 0.0
        %428 = vmatpush1.xpose.msra.mxu0 0.0
        %429 = vmatprep.subr.mxu0 0.0
        %430 = vmatpush1.xpose.msra.mxu0 0.0
        %431 = vmatprep.subr.mxu0 0.0
        %432 = vmatpush1.xpose.msra.mxu0 %v399
        %433 = vmatprep.subr.mxu0 0.0
        %434 = vmatpush2.xpose.msra.mxu0 0.0
        %435 = vmatprep.subr.mxu0 0.0
        %436 = vmatpush2.xpose.msra.mxu0 0.0
        %437 = vmatprep.subr.mxu0 0.0
        %438 = vmatpush2.xpose.msra.mxu0 0.0
        %439 = vmatprep.subr.mxu0 0.0
        %440 = vmatpush2.xpose.msra.mxu0 0.0
        %441 = vmatprep.subr.mxu0 0.0
        %442 = vmatpush2.xpose.msra.mxu0 0.0
        %443 = vmatprep.subr.mxu0 0.0
        %444 = vmatpush2.xpose.msra.mxu0 0.0
        %445 = vmatprep.subr.mxu0 0.0
        %446 = vmatpush2.xpose.msra.mxu0 0.0
        %447 = vmatprep.subr.mxu0 0.0
        %448 = vmatpush2.xpose.msra.mxu0 0.0
        %449 = vmatprep.subr.mxu0 0.0
        %450 = vmatpush2.xpose.msra.mxu0 0.0
        %451 = vmatprep.subr.mxu0 0.0
        %452 = vmatpush2.xpose.msra.mxu0 0.0
        %453 = vmatprep.subr.mxu0 0.0
        %454 = vmatpush2.xpose.msra.mxu0 0.0
        %455 = vmatprep.subr.mxu0 0.0
        %456 = vmatpush2.xpose.msra.mxu0 0.0
        %457 = vmatprep.subr.mxu0 0.0
        %458 = vmatpush2.xpose.msra.mxu0 0.0
        %459 = vmatprep.subr.mxu0 0.0
        %460 = vmatpush2.xpose.msra.mxu0 0.0
        %461 = vmatprep.subr.mxu0 0.0
        %462 = vmatpush2.xpose.msra.mxu0 0.0
        %463 = vmatprep.subr.mxu0 0.0
        %464 = vmatpush2.xpose.msra.mxu0 0.0
        %465 = vmatprep.mubr.f32.mxu0 0.0
        %466 = vmatmul.mubr.f32.gmra.mxu0 %v397
        %v467 = vpop.f32.mrf.mxu0
        %v468 = vadd.f32 0.0, %v467
        %v469 = vpop.f32.mrf.mxu0
        %470 = vdwg.mxu0
        %vm471 = vcmask 64512
        %v472 = vsel %vm471, %v468, -inf
        %473 = vmax.xlane.f32.xlu0 %v472
        %v474 = vpop.xlane.xlu0 %473
        %v475 = vsub.f32 %v468, %v474
        %v476 = vmul.f32 %v475, 1.442695
        %v477 = vpow.pop %v476
        %v478 = vsel %vm471, %v477, 0.0
        %479 = vadd.xlane.f32.xlu0 %v478
        %v480 = vpop.xlane.xlu0 %479
        %v481 = vrcp.pop %v480
        %v482 = vmul.f32 %v477, %v481
        %v483 = vadd.f32 %v482, 0.0
        %484 = vrot.lane.b32.xlu0 %v390, 64
        %v485 = vpop.permute.xlu0 %484
        %v488 = vsel %vm471, %v482, 0
        %490 = vmatprep.subr.mxu0 0.0
        %491 = vmatpush1.msra.mxu0 0.0
        %492 = vmatprep.subr.mxu0 0.0
        %493 = vmatpush1.msra.mxu0 0.0
        %494 = vmatprep.subr.mxu0 0.0
        %495 = vmatpush1.msra.mxu0 0.0
        %496 = vmatprep.subr.mxu0 0.0
        %497 = vmatpush1.msra.mxu0 0.0
        %498 = vmatprep.subr.mxu0 0.0
        %499 = vmatpush1.msra.mxu0 0.0
        %500 = vmatprep.subr.mxu0 0.0
        %501 = vmatpush1.msra.mxu0 0.0
        %502 = vmatprep.subr.mxu0 0.0
        %503 = vmatpush1.msra.mxu0 0.0
        %504 = vmatprep.subr.mxu0 0.0
        %505 = vmatpush1.msra.mxu0 0.0
        %506 = vmatprep.subr.mxu0 0.0
        %507 = vmatpush1.msra.mxu0 0.0
        %508 = vmatprep.subr.mxu0 0.0
        %509 = vmatpush1.msra.mxu0 0.0
        %510 = vmatprep.subr.mxu0 0.0
        %511 = vmatpush1.msra.mxu0 0.0
        %512 = vmatprep.subr.mxu0 0.0
        %513 = vmatpush1.msra.mxu0 0.0
        %514 = vmatprep.subr.mxu0 0.0
        %515 = vmatpush1.msra.mxu0 0.0
        %516 = vmatprep.subr.mxu0 0.0
        %517 = vmatpush1.msra.mxu0 0.0
        %518 = vmatprep.subr.mxu0 0.0
        %519 = vmatpush1.msra.mxu0 0.0
        %520 = vmatprep.subr.mxu0 0.0
        %521 = vmatpush1.msra.mxu0 %v485
        %522 = vmatprep.subr.mxu0 0.0
        %523 = vmatpush2.msra.mxu0 0.0
        %524 = vmatprep.subr.mxu0 0.0
        %525 = vmatpush2.msra.mxu0 0.0
        %526 = vmatprep.subr.mxu0 0.0
        %527 = vmatpush2.msra.mxu0 0.0
        %528 = vmatprep.subr.mxu0 0.0
        %529 = vmatpush2.msra.mxu0 0.0
        %530 = vmatprep.subr.mxu0 0.0
        %531 = vmatpush2.msra.mxu0 0.0
        %532 = vmatprep.subr.mxu0 0.0
        %533 = vmatpush2.msra.mxu0 0.0
        %534 = vmatprep.subr.mxu0 0.0
        %535 = vmatpush2.msra.mxu0 0.0
        %536 = vmatprep.subr.mxu0 0.0
        %537 = vmatpush2.msra.mxu0 0.0
        %538 = vmatprep.subr.mxu0 0.0
        %539 = vmatpush2.msra.mxu0 0.0
        %540 = vmatprep.subr.mxu0 0.0
        %541 = vmatpush2.msra.mxu0 0.0
        %542 = vmatprep.subr.mxu0 0.0
        %543 = vmatpush2.msra.mxu0 0.0
        %544 = vmatprep.subr.mxu0 0.0
        %545 = vmatpush2.msra.mxu0 0.0
        %546 = vmatprep.subr.mxu0 0.0
        %547 = vmatpush2.msra.mxu0 0.0
        %548 = vmatprep.subr.mxu0 0.0
        %549 = vmatpush2.msra.mxu0 0.0
        %550 = vmatprep.subr.mxu0 0.0
        %551 = vmatpush2.msra.mxu0 0.0
        %552 = vmatprep.subr.mxu0 0.0
        %553 = vmatpush2.msra.mxu0 0.0
        %554 = vmatprep.mubr.f32.mxu0 0.0
        %555 = vmatmul.mubr.f32.gmra.mxu0 %v488
        %v556 = vpop.f32.mrf.mxu0
        %v557 = vadd.f32 0.0, %v556
        %v558 = vpop.f32.mrf.mxu0
        %559 = vdwg.mxu0
        %v560 = vld [vmem:[#allocation7] sm:$0xff]
        %v561 = vld [vmem:[#allocation7 + $0x8] sm:$0xff]
        %562 = vrot.lane.b32.xlu0 %v390, 112
        %v563 = vpop.permute.xlu0 %562
        %564 = vrot.lane.b32.xlu0 %v390, 80
        %v565 = vpop.permute.xlu0 %564
        %v566 = vsel %vm396, %v563, 0
        %v568 = vsel %vm396, %v565, 0
        %570 = vmatprep.subr.mxu0 0.0
        %571 = vmatpush1.xpose.msra.mxu0 0.0
        %572 = vmatprep.subr.mxu0 0.0
        %573 = vmatpush1.xpose.msra.mxu0 0.0
        %574 = vmatprep.subr.mxu0 0.0
        %575 = vmatpush1.xpose.msra.mxu0 0.0
        %576 = vmatprep.subr.mxu0 0.0
        %577 = vmatpush1.xpose.msra.mxu0 0.0
        %578 = vmatprep.subr.mxu0 0.0
        %579 = vmatpush1.xpose.msra.mxu0 0.0
        %580 = vmatprep.subr.mxu0 0.0
        %581 = vmatpush1.xpose.msra.mxu0 0.0
        %582 = vmatprep.subr.mxu0 0.0
        %583 = vmatpush1.xpose.msra.mxu0 0.0
        %584 = vmatprep.subr.mxu0 0.0
        %585 = vmatpush1.xpose.msra.mxu0 0.0
        %586 = vmatprep.subr.mxu0 0.0
        %587 = vmatpush1.xpose.msra.mxu0 0.0
        %588 = vmatprep.subr.mxu0 0.0
        %589 = vmatpush1.xpose.msra.mxu0 0.0
        %590 = vmatprep.subr.mxu0 0.0
        %591 = vmatpush1.xpose.msra.mxu0 0.0
        %592 = vmatprep.subr.mxu0 0.0
        %593 = vmatpush1.xpose.msra.mxu0 0.0
        %594 = vmatprep.subr.mxu0 0.0
        %595 = vmatpush1.xpose.msra.mxu0 0.0
        %596 = vmatprep.subr.mxu0 0.0
        %597 = vmatpush1.xpose.msra.mxu0 0.0
        %598 = vmatprep.subr.mxu0 0.0
        %599 = vmatpush1.xpose.msra.mxu0 0.0
        %600 = vmatprep.subr.mxu0 0.0
        %601 = vmatpush1.xpose.msra.mxu0 %v568
        %602 = vmatprep.subr.mxu0 0.0
        %603 = vmatpush2.xpose.msra.mxu0 0.0
        %604 = vmatprep.subr.mxu0 0.0
        %605 = vmatpush2.xpose.msra.mxu0 0.0
        %606 = vmatprep.subr.mxu0 0.0
        %607 = vmatpush2.xpose.msra.mxu0 0.0
        %608 = vmatprep.subr.mxu0 0.0
        %609 = vmatpush2.xpose.msra.mxu0 0.0
        %610 = vmatprep.subr.mxu0 0.0
        %611 = vmatpush2.xpose.msra.mxu0 0.0
        %612 = vmatprep.subr.mxu0 0.0
        %613 = vmatpush2.xpose.msra.mxu0 0.0
        %614 = vmatprep.subr.mxu0 0.0
        %615 = vmatpush2.xpose.msra.mxu0 0.0
        %616 = vmatprep.subr.mxu0 0.0
        %617 = vmatpush2.xpose.msra.mxu0 0.0
        %618 = vmatprep.subr.mxu0 0.0
        %619 = vmatpush2.xpose.msra.mxu0 0.0
        %620 = vmatprep.subr.mxu0 0.0
        %621 = vmatpush2.xpose.msra.mxu0 0.0
        %622 = vmatprep.subr.mxu0 0.0
        %623 = vmatpush2.xpose.msra.mxu0 0.0
        %624 = vmatprep.subr.mxu0 0.0
        %625 = vmatpush2.xpose.msra.mxu0 0.0
        %626 = vmatprep.subr.mxu0 0.0
        %627 = vmatpush2.xpose.msra.mxu0 0.0
        %628 = vmatprep.subr.mxu0 0.0
        %629 = vmatpush2.xpose.msra.mxu0 0.0
        %630 = vmatprep.subr.mxu0 0.0
        %631 = vmatpush2.xpose.msra.mxu0 0.0
        %632 = vmatprep.subr.mxu0 0.0
        %633 = vmatpush2.xpose.msra.mxu0 0.0
        %634 = vmatprep.mubr.f32.mxu0 0.0
        %635 = vmatmul.mubr.f32.gmra.mxu0 %v566
        %v636 = vpop.f32.mrf.mxu0
        %v637 = vadd.f32 0.0, %v636
        %v638 = vpop.f32.mrf.mxu0
        %639 = vdwg.mxu0
        %v640 = vsel %vm471, %v637, -inf
        %641 = vmax.xlane.f32.xlu0 %v640
        %v642 = vpop.xlane.xlu0 %641
        %v643 = vsub.f32 %v637, %v642
        %v644 = vmul.f32 %v643, 1.442695
        %v645 = vpow.pop %v644
        %v646 = vsel %vm471, %v645, 0.0
        %647 = vadd.xlane.f32.xlu0 %v646
        %v648 = vpop.xlane.xlu0 %647
        %v649 = vrcp.pop %v648
        %v650 = vmul.f32 %v645, %v649
        %v651 = vadd.f32 %v483, %v650
        %652 = vrot.lane.b32.xlu0 %v390, 48
        %v653 = vpop.permute.xlu0 %652
        %v656 = vsel %vm471, %v650, 0
        %658 = vmatprep.subr.mxu0 0.0
        %659 = vmatpush1.msra.mxu0 0.0
        %660 = vmatprep.subr.mxu0 0.0
        %661 = vmatpush1.msra.mxu0 0.0
        %662 = vmatprep.subr.mxu0 0.0
        %663 = vmatpush1.msra.mxu0 0.0
        %664 = vmatprep.subr.mxu0 0.0
        %665 = vmatpush1.msra.mxu0 0.0
        %666 = vmatprep.subr.mxu0 0.0
        %667 = vmatpush1.msra.mxu0 0.0
        %668 = vmatprep.subr.mxu0 0.0
        %669 = vmatpush1.msra.mxu0 0.0
        %670 = vmatprep.subr.mxu0 0.0
        %671 = vmatpush1.msra.mxu0 0.0
        %672 = vmatprep.subr.mxu0 0.0
        %673 = vmatpush1.msra.mxu0 0.0
        %674 = vmatprep.subr.mxu0 0.0
        %675 = vmatpush1.msra.mxu0 0.0
        %676 = vmatprep.subr.mxu0 0.0
        %677 = vmatpush1.msra.mxu0 0.0
        %678 = vmatprep.subr.mxu0 0.0
        %679 = vmatpush1.msra.mxu0 0.0
        %680 = vmatprep.subr.mxu0 0.0
        %681 = vmatpush1.msra.mxu0 0.0
        %682 = vmatprep.subr.mxu0 0.0
        %683 = vmatpush1.msra.mxu0 0.0
        %684 = vmatprep.subr.mxu0 0.0
        %685 = vmatpush1.msra.mxu0 0.0
        %686 = vmatprep.subr.mxu0 0.0
        %687 = vmatpush1.msra.mxu0 0.0
        %688 = vmatprep.subr.mxu0 0.0
        %689 = vmatpush1.msra.mxu0 %v653
        %690 = vmatprep.subr.mxu0 0.0
        %691 = vmatpush2.msra.mxu0 0.0
        %692 = vmatprep.subr.mxu0 0.0
        %693 = vmatpush2.msra.mxu0 0.0
        %694 = vmatprep.subr.mxu0 0.0
        %695 = vmatpush2.msra.mxu0 0.0
        %696 = vmatprep.subr.mxu0 0.0
        %697 = vmatpush2.msra.mxu0 0.0
        %698 = vmatprep.subr.mxu0 0.0
        %699 = vmatpush2.msra.mxu0 0.0
        %700 = vmatprep.subr.mxu0 0.0
        %701 = vmatpush2.msra.mxu0 0.0
        %702 = vmatprep.subr.mxu0 0.0
        %703 = vmatpush2.msra.mxu0 0.0
        %704 = vmatprep.subr.mxu0 0.0
        %705 = vmatpush2.msra.mxu0 0.0
        %706 = vmatprep.subr.mxu0 0.0
        %707 = vmatpush2.msra.mxu0 0.0
        %708 = vmatprep.subr.mxu0 0.0
        %709 = vmatpush2.msra.mxu0 0.0
        %710 = vmatprep.subr.mxu0 0.0
        %711 = vmatpush2.msra.mxu0 0.0
        %712 = vmatprep.subr.mxu0 0.0
        %713 = vmatpush2.msra.mxu0 0.0
        %714 = vmatprep.subr.mxu0 0.0
        %715 = vmatpush2.msra.mxu0 0.0
        %716 = vmatprep.subr.mxu0 0.0
        %717 = vmatpush2.msra.mxu0 0.0
        %718 = vmatprep.subr.mxu0 0.0
        %719 = vmatpush2.msra.mxu0 0.0
        %720 = vmatprep.subr.mxu0 0.0
        %721 = vmatpush2.msra.mxu0 0.0
        %722 = vmatprep.mubr.f32.mxu0 0.0
        %723 = vmatmul.mubr.f32.gmra.mxu0 %v656
        %v724 = vpop.f32.mrf.mxu0
        %v725 = vadd.f32 0.0, %v724
        %v726 = vpop.f32.mrf.mxu0
        %727 = vdwg.mxu0
        %v728 = vld [vmem:[#allocation7 + $0x10] sm:$0xff]
        %v729 = vld [vmem:[#allocation7 + $0x18] sm:$0xff]
        %v731 = vsel %vm396, %v725, 0
        %733 = vmatprep.subr.mxu0 0.0
        %734 = vmatpush1.msra.mxu0 0.0
        %735 = vmatprep.subr.mxu0 0.0
        %736 = vmatpush1.msra.mxu0 0.0
        %737 = vmatprep.subr.mxu0 0.0
        %738 = vmatpush1.msra.mxu0 0.0
        %739 = vmatprep.subr.mxu0 0.0
        %740 = vmatpush1.msra.mxu0 0.0
        %741 = vmatprep.subr.mxu0 0.0
        %742 = vmatpush1.msra.mxu0 0.0
        %743 = vmatprep.subr.mxu0 0.0
        %744 = vmatpush1.msra.mxu0 0.0
        %745 = vmatprep.subr.mxu0 0.0
        %746 = vmatpush1.msra.mxu0 0.0
        %747 = vmatprep.subr.mxu0 0.0
        %748 = vmatpush1.msra.mxu0 0.0
        %749 = vmatprep.subr.mxu0 0.0
        %750 = vmatpush1.msra.mxu0 0.0
        %751 = vmatprep.subr.mxu0 0.0
        %752 = vmatpush1.msra.mxu0 0.0
        %753 = vmatprep.subr.mxu0 0.0
        %754 = vmatpush1.msra.mxu0 0.0
        %755 = vmatprep.subr.mxu0 0.0
        %756 = vmatpush1.msra.mxu0 0.0
        %757 = vmatprep.subr.mxu0 0.0
        %758 = vmatpush1.msra.mxu0 0.0
        %759 = vmatprep.subr.mxu0 0.0
        %760 = vmatpush1.msra.mxu0 0.0
        %761 = vmatprep.subr.mxu0 0.0
        %762 = vmatpush1.msra.mxu0 %v729
        %763 = vmatprep.subr.mxu0 0.0
        %764 = vmatpush1.msra.mxu0 %v728
        %765 = vmatprep.subr.mxu0 0.0
        %766 = vmatpush2.msra.mxu0 0.0
        %767 = vmatprep.subr.mxu0 0.0
        %768 = vmatpush2.msra.mxu0 0.0
        %769 = vmatprep.subr.mxu0 0.0
        %770 = vmatpush2.msra.mxu0 0.0
        %771 = vmatprep.subr.mxu0 0.0
        %772 = vmatpush2.msra.mxu0 0.0
        %773 = vmatprep.subr.mxu0 0.0
        %774 = vmatpush2.msra.mxu0 0.0
        %775 = vmatprep.subr.mxu0 0.0
        %776 = vmatpush2.msra.mxu0 0.0
        %777 = vmatprep.subr.mxu0 0.0
        %778 = vmatpush2.msra.mxu0 0.0
        %779 = vmatprep.subr.mxu0 0.0
        %780 = vmatpush2.msra.mxu0 0.0
        %781 = vmatprep.subr.mxu0 0.0
        %782 = vmatpush2.msra.mxu0 0.0
        %783 = vmatprep.subr.mxu0 0.0
        %784 = vmatpush2.msra.mxu0 0.0
        %785 = vmatprep.subr.mxu0 0.0
        %786 = vmatpush2.msra.mxu0 0.0
        %787 = vmatprep.subr.mxu0 0.0
        %788 = vmatpush2.msra.mxu0 0.0
        %789 = vmatprep.subr.mxu0 0.0
        %790 = vmatpush2.msra.mxu0 0.0
        %791 = vmatprep.subr.mxu0 0.0
        %792 = vmatpush2.msra.mxu0 0.0
        %793 = vmatprep.subr.mxu0 0.0
        %794 = vmatpush2.msra.mxu0 0.0
        %795 = vmatprep.subr.mxu0 0.0
        %796 = vmatpush2.msra.mxu0 0.0
        %797 = vmatprep.mubr.f32.mxu0 0.0
        %798 = vmatmul.mubr.f32.gmra.mxu0 %v731
        %v799 = vpop.f32.mrf.mxu0
        %v800 = vadd.f32 0.0, %v799
        %v801 = vpop.f32.mrf.mxu0
        %802 = vdwg.mxu0
        %v804 = vsel %vm396, %v557, 0
        %806 = vmatprep.subr.mxu0 0.0
        %807 = vmatpush1.msra.mxu0 0.0
        %808 = vmatprep.subr.mxu0 0.0
        %809 = vmatpush1.msra.mxu0 0.0
        %810 = vmatprep.subr.mxu0 0.0
        %811 = vmatpush1.msra.mxu0 0.0
        %812 = vmatprep.subr.mxu0 0.0
        %813 = vmatpush1.msra.mxu0 0.0
        %814 = vmatprep.subr.mxu0 0.0
        %815 = vmatpush1.msra.mxu0 0.0
        %816 = vmatprep.subr.mxu0 0.0
        %817 = vmatpush1.msra.mxu0 0.0
        %818 = vmatprep.subr.mxu0 0.0
        %819 = vmatpush1.msra.mxu0 0.0
        %820 = vmatprep.subr.mxu0 0.0
        %821 = vmatpush1.msra.mxu0 0.0
        %822 = vmatprep.subr.mxu0 0.0
        %823 = vmatpush1.msra.mxu0 0.0
        %824 = vmatprep.subr.mxu0 0.0
        %825 = vmatpush1.msra.mxu0 0.0
        %826 = vmatprep.subr.mxu0 0.0
        %827 = vmatpush1.msra.mxu0 0.0
        %828 = vmatprep.subr.mxu0 0.0
        %829 = vmatpush1.msra.mxu0 0.0
        %830 = vmatprep.subr.mxu0 0.0
        %831 = vmatpush1.msra.mxu0 0.0
        %832 = vmatprep.subr.mxu0 0.0
        %833 = vmatpush1.msra.mxu0 0.0
        %834 = vmatprep.subr.mxu0 0.0
        %835 = vmatpush1.msra.mxu0 %v561
        %836 = vmatprep.subr.mxu0 0.0
        %837 = vmatpush1.msra.mxu0 %v560
        %838 = vmatprep.subr.mxu0 0.0
        %839 = vmatpush2.msra.mxu0 0.0
        %840 = vmatprep.subr.mxu0 0.0
        %841 = vmatpush2.msra.mxu0 0.0
        %842 = vmatprep.subr.mxu0 0.0
        %843 = vmatpush2.msra.mxu0 0.0
        %844 = vmatprep.subr.mxu0 0.0
        %845 = vmatpush2.msra.mxu0 0.0
        %846 = vmatprep.subr.mxu0 0.0
        %847 = vmatpush2.msra.mxu0 0.0
        %848 = vmatprep.subr.mxu0 0.0
        %849 = vmatpush2.msra.mxu0 0.0
        %850 = vmatprep.subr.mxu0 0.0
        %851 = vmatpush2.msra.mxu0 0.0
        %852 = vmatprep.subr.mxu0 0.0
        %853 = vmatpush2.msra.mxu0 0.0
        %854 = vmatprep.subr.mxu0 0.0
        %855 = vmatpush2.msra.mxu0 0.0
        %856 = vmatprep.subr.mxu0 0.0
        %857 = vmatpush2.msra.mxu0 0.0
        %858 = vmatprep.subr.mxu0 0.0
        %859 = vmatpush2.msra.mxu0 0.0
        %860 = vmatprep.subr.mxu0 0.0
        %861 = vmatpush2.msra.mxu0 0.0
        %862 = vmatprep.subr.mxu0 0.0
        %863 = vmatpush2.msra.mxu0 0.0
        %864 = vmatprep.subr.mxu0 0.0
        %865 = vmatpush2.msra.mxu0 0.0
        %866 = vmatprep.subr.mxu0 0.0
        %867 = vmatpush2.msra.mxu0 0.0
        %868 = vmatprep.subr.mxu0 0.0
        %869 = vmatpush2.msra.mxu0 0.0
        %870 = vmatprep.mubr.f32.mxu0 0.0
        %871 = vmatmul.mubr.f32.gmra.mxu0 %v804
        %v872 = vpop.f32.mrf.mxu0
        %v873 = vadd.f32 %v800, %v872
        %v874 = vpop.f32.mrf.mxu0
        %875 = vdwg.mxu0
        %v876 = vld [vmem:[%s4] sm:$0x1]
        %v878 = vlaneseq
        %v879 = vshrl.u32 %v878, 7
        %v880 = vsub.s32 0, %v879
        %v881 = vrot.slane %v876, %v880
        %v883 = vadd.f32 %v873, %v881
        %884 = vst.msk [vmem:[%s299] sm:$0xff] %vm319, %v883
        %v885 = vmul.f32 %v651, 0.5
        %886 = vst.msk [vmem:[%s306] sm:$0xff] %vm471, %v885
        %s887 = sand.u32 %s146, 1
        %s888 = scalar_lea.sflag [#allocation4], %s887
        %s889 = sand.u32 %s146, 1
        %s890 = smul.addr %s889, 8
        %s891 = scalar_lea.vmem [#allocation8], %s890
        %s892 = sand.u32 %s172, 1
        %s893 = scalar_lea.sflag [#allocation10], %s892
        %s894 = sand.u32 %s172, 1
        %s895 = smul.addr %s894, 8
        %s896 = scalar_lea.vmem [#allocation9], %s895
        // Predicated region
        $region53: #{tpu_custom_call.1} parent=39 // pred_check
          %p897 = pneg %p156
        $region54: #{tpu_custom_call.1} parent=39 // pred_check_branch
          %899 = sbr.rel (%p897) target = $region56
        $region55: #{tpu_custom_call.1} parent=39 // pred_region
          %s901 = ssub.s32 128, 128
          %902 = vsyncadd %s888, %s901
          %s903 = smul.addr %s28, 128
          %s904 = scalar_lea.hbm %s5, %s903
          %s906 = sshll.u32 %s891, 4
          %s907 = int_to_ptr.vmem [resolvable:$true] %s906
          %909 = dma.vmem_to_hbm [thread:$0]  %s907, 128, %s904, %s888
        $region56: #{tpu_custom_call.1} parent=39 // pred_fallthru
          _
        // Predicated region
        $region57: #{tpu_custom_call.1} parent=39 // pred_check
          %p910 = pneg %p182
        $region58: #{tpu_custom_call.1} parent=39 // pred_check_branch
          %912 = sbr.rel (%p910) target = $region60
        $region59: #{tpu_custom_call.1} parent=39 // pred_region
          %s914 = ssub.s32 128, 128
          %915 = vsyncadd %s893, %s914
          %s916 = smul.addr %s28, 128
          %s917 = scalar_lea.hbm %s6, %s916
          %s919 = sshll.u32 %s896, 4
          %s920 = int_to_ptr.vmem [resolvable:$true] %s919
          %922 = dma.vmem_to_hbm [thread:$0]  %s920, 128, %s917, %s893
        $region60: #{tpu_custom_call.1} parent=39 // pred_fallthru
          _
      $region40: #{tpu_custom_call.1} parent=5 // pred_fallthru
        _
      %p923 = scmp.le.s32.totalorder 2, %s23
      // Predicated region
      $region61: #{tpu_custom_call.1} parent=5 // pred_check
        %p924 = pneg %p923
      $region62: #{tpu_custom_call.1} parent=5 // pred_check_branch
        %926 = sbr.rel (%p924) target = $region64
      $region63: #{tpu_custom_call.1} parent=5 // pred_region
        %s927 = ssub.s32 %s23, 2
        // Predicated region
        $region65: #{tpu_custom_call.1} parent=63 // pred_check
          %p928 = pneg %p162
        $region66: #{tpu_custom_call.1} parent=63 // pred_check_branch
          %930 = sbr.rel (%p928) target = $region68
        $region67: #{tpu_custom_call.1} parent=63 // pred_region
          %s931 = sand.u32 %s147, 1
          %s932 = scalar_lea.sflag [#allocation4], %s931
          %s933 = sand.u32 %s147, 1
          %s934 = smul.addr %s933, 8
          %s935 = scalar_lea.vmem [#allocation8], %s934
          %936 = dma.done %s932, 128
        $region68: #{tpu_custom_call.1} parent=63 // pred_fallthru
          _
        // Predicated region
        $region69: #{tpu_custom_call.1} parent=63 // pred_check
          %p937 = pneg %p188
        $region70: #{tpu_custom_call.1} parent=63 // pred_check_branch
          %939 = sbr.rel (%p937) target = $region72
        $region71: #{tpu_custom_call.1} parent=63 // pred_region
          %s940 = sand.u32 %s173, 1
          %s941 = scalar_lea.sflag [#allocation10], %s940
          %s942 = sand.u32 %s173, 1
          %s943 = smul.addr %s942, 8
          %s944 = scalar_lea.vmem [#allocation9], %s943
          %945 = dma.done %s941, 128
        $region72: #{tpu_custom_call.1} parent=63 // pred_fallthru
          _
      $region64: #{tpu_custom_call.1} parent=5 // pred_fallthru
        _
    $region6: #{tpu_custom_call.1} parent=1 // loop_footer
      %s27 = sadd.s32 1, %s23
    $region7: #{tpu_custom_call.1} parent=1 // loop_footer_branch
      %22 = sbr.rel target = $region3
    $region8: #{tpu_custom_call.1} parent=1 // loop_exit
      _
    %946 = vsyncpa [#allocation3], 1
    %s947 = scalar_lea.sflag [#allocation3], 1
    %948 = vsyncpa %s947, 1
    %949 = vsyncpa [#allocation6], 1
    %950 = vsyncpa [#allocation4], 1
    %s951 = scalar_lea.sflag [#allocation4], 1
    %952 = vsyncpa %s951, 1
    %953 = vsyncpa [#allocation10], 1
    %s954 = scalar_lea.sflag [#allocation10], 1
    %955 = vsyncpa %s954, 1

</llo_original>
